<compile_context>
chip_gen: v6e
topology: v6e:2x2x1
jax: 0.10.0
libtpu: 0.0.40
codegen_flags: <defaults>
</compile_context>

<pallas_src>
import functools

import jax
import jax.numpy as jnp
from jax.experimental import pallas as pl
from jax.experimental.pallas import tpu as pltpu

SMOOTHING = 0.1


def _round_up(a, b):
    return (a + b - 1) // b * b


def _vmem_limit_bytes():
    """Scoped VMEM limit: ~3/4 of physical, capped at 96 MiB (48 MiB on v7x)."""
    try:
        cap = int(pltpu.get_tpu_info().vmem_capacity_bytes)
    except Exception:  # pragma: no cover - conservative (v7x-sized) fallback
        cap = 64 * 1024 * 1024
    return min((cap * 3) // 4, 96 * 1024 * 1024)


# ----------------------------------------------------------------------------
# Path A: full class axis in one block (small / medium C).
# ----------------------------------------------------------------------------
def _single_pass_kernel(x_ref, t_ref, out_ref, *, n_valid, confidence,
                        smoothing):
    i = pl.program_id(0)
    x = x_ref[...].astype(jnp.float32)                      # (TB, C)
    tb, c = x.shape

    # Numerically stable per-row logsumexp(x).
    m = jnp.max(x, axis=-1, keepdims=True)                  # (TB, 1)
    sumexp = jnp.sum(jnp.exp(x - m), axis=-1, keepdims=True)
    lse = m + jnp.log(sumexp)                                # (TB, 1)

    # Gather x[r, target[r]] via broadcast compare + select (no float one-hot,
    # no materialized (TB,C) iota).
    cls = jax.lax.broadcasted_iota(jnp.int32, (1, c), 1)     # (1, C)
    picked = jnp.sum(jnp.where(cls == t_ref[...], x, 0.0),
                     axis=-1, keepdims=True)                 # (TB, 1)
    sum_x = jnp.sum(x, axis=-1, keepdims=True)               # (TB, 1)

    # conf*(lse - x[t]) + smooth*(lse - sum(x)/C), with conf + smooth == 1.
    loss = lse - confidence * picked - (smoothing / c) * sum_x

    # Mask ragged / out-of-range rows with a SELECT and keep it BEFORE the
    # reduction: OOB rows of the last block may hold undefined (NaN) data.
    row = i * tb + jax.lax.broadcasted_iota(jnp.int32, (tb, 1), 0)
    masked = jnp.where(row < n_valid, loss, 0.0)

    # One partial sum per grid step, written as a lane-dense (8,128) block.
    tile_sum = jnp.sum(masked, axis=0, keepdims=True)        # (1, 1)
    out_ref[...] = jnp.broadcast_to(tile_sum, (8, 128))


# ----------------------------------------------------------------------------
# Path B: class-tiled online logsumexp (vocab-sized C).
# ----------------------------------------------------------------------------
def _class_tiled_kernel(x_ref, t_ref, out_ref, m_sc, l_sc, sx_sc, pk_sc, *,
                        n_valid, c_total, confidence, smoothing, mask_classes):
    i = pl.program_id(0)
    k = pl.program_id(1)

    @pl.when(k == 0)
    def _():
        m_sc[...] = jnp.full_like(m_sc, -jnp.inf)
        l_sc[...] = jnp.zeros_like(l_sc)
        sx_sc[...] = jnp.zeros_like(sx_sc)
        pk_sc[...] = jnp.zeros_like(pk_sc)

    x = x_ref[...].astype(jnp.float32)                       # (TB, TC)
    tb, tc = x.shape
    cls = k * tc + jax.lax.broadcasted_iota(jnp.int32, (1, tc), 1)  # global ids

    if mask_classes:                                          # ragged class axis
        lane_ok = cls < c_total
        x_m = jnp.where(lane_ok, x, -jnp.inf)                 # for max / exp
        x_s = jnp.where(lane_ok, x, 0.0)                      # for plain sum
    else:
        x_m = x
        x_s = x

    # Online logsumexp update.
    m_new = jnp.maximum(m_sc[...], jnp.max(x_m, axis=-1, keepdims=True))
    alpha = jnp.exp(m_sc[...] - m_new)
    l_sc[...] = alpha * l_sc[...] + jnp.sum(jnp.exp(x_m - m_new),
                                            axis=-1, keepdims=True)
    m_sc[...] = m_new
    sx_sc[...] = sx_sc[...] + jnp.sum(x_s, axis=-1, keepdims=True)
    # Targets are always < c_total, so no extra lane mask is needed for picked.
    pk_sc[...] = pk_sc[...] + jnp.sum(jnp.where(cls == t_ref[...], x, 0.0),
                                      axis=-1, keepdims=True)

    @pl.when(k == pl.num_programs(1) - 1)
    def _():
        lse = m_sc[...] + jnp.log(l_sc[...])
        loss = lse - confidence * pk_sc[...] - (smoothing / c_total) * sx_sc[...]
        row = i * tb + jax.lax.broadcasted_iota(jnp.int32, (tb, 1), 0)
        masked = jnp.where(row < n_valid, loss, 0.0)          # select BEFORE sum
        out_ref[...] = jnp.broadcast_to(
            jnp.sum(masked, axis=0, keepdims=True), (8, 128))


# ----------------------------------------------------------------------------
# Wrapper
# ----------------------------------------------------------------------------
def label_smoothing_loss(x, target, *, smoothing=SMOOTHING, batch_tile=None,
                         class_tile=None, single_pass_class_limit=32768):
    """x: [N, C] float, target: [N] int. Returns scalar mean smoothed NLL."""
    n, c = x.shape
    confidence = 1.0 - smoothing
    t2d = target.astype(jnp.int32).reshape(n, 1)

    vmem_limit = _vmem_limit_bytes()
    budget = (vmem_limit * 11) // 20            # ~55% for blocks + live temps
    in_bytes = jnp.dtype(x.dtype).itemsize
    use_tiled = (class_tile is not None) or (c > single_pass_class_limit)

    if not use_tiled:
        # Per-row VMEM: double-buffered input block (actual dtype) + ~5 live
        # full-width f32 temporaries + lane-padded (TB,1) target block (x2).
        per_row = 2 * c * in_bytes + 5 * c * 4 + 2 * 512 + 64
        tb = batch_tile if batch_tile is not None else budget // per_row
        tb = min(max(8, (tb // 8) * 8), _round_up(n, 8))
        grid_b = pl.cdiv(n, tb)

        kernel = functools.partial(_single_pass_kernel, n_valid=n,
                                   confidence=confidence, smoothing=smoothing)
        per_tile = pl.pallas_call(
            kernel,
            out_shape=jax.ShapeDtypeStruct((grid_b * 8, 128), jnp.float32),
            grid_spec=pltpu.PrefetchScalarGridSpec(
                num_scalar_prefetch=0,
                grid=(grid_b,),
                in_specs=[pl.BlockSpec((tb, c), lambda i: (i, 0)),   # logits
                          pl.BlockSpec((tb, 1), lambda i: (i, 0))],  # targets
                out_specs=pl.BlockSpec((8, 128), lambda i: (i, 0)),
            ),
            compiler_params=pltpu.CompilerParams(
                dimension_semantics=("parallel",),
                vmem_limit_bytes=int(vmem_limit)),
        )(x, t2d)
    else:
        c_pad = _round_up(c, 128)
        tc = class_tile if class_tile is not None else 2048
        tc = min(_round_up(tc, 128), c_pad)
        # Per-row VMEM: double-buffered (TB,TC) input + ~5 f32 temps + 4 lane-
        # padded f32 scratch columns + lane-padded target block.
        per_row = 2 * tc * in_bytes + 5 * tc * 4 + 4 * 512 + 2 * 512 + 64
        tb = batch_tile if batch_tile is not None else budget // per_row
        tb = min(max(8, (tb // 8) * 8), _round_up(n, 8))
        grid_b = pl.cdiv(n, tb)
        grid_k = pl.cdiv(c, tc)

        kernel = functools.partial(_class_tiled_kernel, n_valid=n, c_total=c,
                                   confidence=confidence, smoothing=smoothing,
                                   mask_classes=(c % tc) != 0)
        per_tile = pl.pallas_call(
            kernel,
            out_shape=jax.ShapeDtypeStruct((grid_b * 8, 128), jnp.float32),
            grid_spec=pltpu.PrefetchScalarGridSpec(
                num_scalar_prefetch=0,
                grid=(grid_b, grid_k),
                in_specs=[pl.BlockSpec((tb, tc), lambda i, k: (i, k)),
                          pl.BlockSpec((tb, 1), lambda i, k: (i, 0))],
                out_specs=pl.BlockSpec((8, 128), lambda i, k: (i, 0)),
                scratch_shapes=[pltpu.VMEM((tb, 1), jnp.float32)] * 4,
            ),
            compiler_params=pltpu.CompilerParams(
                dimension_semantics=("parallel", "arbitrary"),
                vmem_limit_bytes=int(vmem_limit)),
        )(x, t2d)

    # Tiny finalize in the wrapper: one partial sum per batch tile (element
    # [0,0] of each (8,128) block), summed and divided by the true row count.
    totals = per_tile.reshape(grid_b, 8, 128)[:, 0, 0]
    return jnp.sum(totals) / n


def _reference(x, target, smoothing=SMOOTHING):
    logprobs = jax.nn.log_softmax(x.astype(jnp.float32), axis=-1)
    nll = -jnp.take_along_axis(logprobs, target[:, None].astype(jnp.int32),
                               axis=-1)[:, 0]
    smooth = -jnp.mean(logprobs, axis=-1)
    return jnp.mean((1.0 - smoothing) * nll + smoothing * smooth)


if __name__ == "__main__":
    key = jax.random.PRNGKey(0)
    k1, k2, k3, k4, k5, k6, k7, k8 = jax.random.split(key, 8)

    # Case 1: small, aligned shapes (single-pass path).
    N, C = 16, 128
    x = jax.random.normal(k1, (N, C), dtype=jnp.float32)
    t = jax.random.randint(k2, (N,), 0, C, dtype=jnp.int32)
    out = label_smoothing_loss(x, t)
    jax.block_until_ready(out)
    ref = _reference(x, t)
    assert jnp.allclose(out, ref, atol=1e-4, rtol=1e-5), (out, ref)

    # Case 2: ragged batch, C < 128 (single-pass path, masked rows / lanes).
    N2, C2 = 13, 64
    x2 = jax.random.normal(k3, (N2, C2), dtype=jnp.float32)
    t2 = jax.random.randint(k4, (N2,), 0, C2, dtype=jnp.int32)
    out2 = label_smoothing_loss(x2, t2)
    jax.block_until_ready(out2)
    ref2 = _reference(x2, t2)
    assert jnp.allclose(out2, ref2, atol=1e-4, rtol=1e-5), (out2, ref2)

    # Case 3: multiple batch tiles with a ragged last tile (per-tile sums).
    N3, C3 = 40, 128
    x3 = jax.random.normal(k5, (N3, C3), dtype=jnp.float32)
    t3 = jax.random.randint(k6, (N3,), 0, C3, dtype=jnp.int32)
    out3 = label_smoothing_loss(x3, t3, batch_tile=16)
    jax.block_until_ready(out3)
    ref3 = _reference(x3, t3)
    assert jnp.allclose(out3, ref3, atol=1e-4, rtol=1e-5), (out3, ref3)

    # Case 4: class-tiled online-LSE path (forced), bf16 logits, ragged class
    # tiles (320 = 2 full 128-lane tiles + one 64-lane ragged tile).
    N4, C4 = 24, 320
    x4 = jax.random.normal(k7, (N4, C4), dtype=jnp.float32).astype(jnp.bfloat16)
    t4 = jax.random.randint(k8, (N4,), 0, C4, dtype=jnp.int32)
    out4 = label_smoothing_loss(x4, t4, class_tile=128)
    jax.block_until_ready(out4)
    ref4 = _reference(x4, t4)
    assert jnp.allclose(out4, ref4, atol=1e-3, rtol=1e-4), (out4, ref4)

    print("KERNEL_OK")
</pallas_src>

<mosaic_0001>
module attributes {stable_mosaic.version = 11 : i64} {
  func.func @_single_pass_kernel(%arg0: i32, %arg1: memref<16x128xf32, #tpu.memory_space<vmem>>, %arg2: memref<16x1xi32, #tpu.memory_space<vmem>>, %arg3: memref<8x128xf32, #tpu.memory_space<vmem>>) attributes {dimension_semantics = [#tpu.dimension_semantics<parallel>], iteration_bounds = array<i64: 1>, scalar_prefetch = 0 : i64, scratch_operands = 0 : i64, tpu.core_type = #tpu.core_type<tc>, window_params = [{transform_indices = @transform_0, window_bounds = array<i64: 16, 128>}, {transform_indices = @transform_1, window_bounds = array<i64: 16, 1>}, {transform_indices = @transform_2, window_bounds = array<i64: 8, 128>}]} {
    %c0 = arith.constant 0 : index
    %c0_0 = arith.constant 0 : index
    %0 = vector.load %arg1[%c0, %c0_0] : memref<16x128xf32, #tpu.memory_space<vmem>>, vector<16x128xf32>
    %cst = arith.constant dense<0xFF800000> : vector<16xf32>
    %1 = vector.multi_reduction <maximumf>, %0, %cst [1] : vector<16x128xf32> to vector<16xf32>
    %2 = vector.shape_cast %1 : vector<16xf32> to vector<16x1xf32>
    %3 = vector.broadcast %2 : vector<16x1xf32> to vector<16x128xf32>
    %4 = arith.subf %0, %3 : vector<16x128xf32>
    %5 = math.exp %4 : vector<16x128xf32>
    %cst_1 = arith.constant dense<0.000000e+00> : vector<16xf32>
    %6 = vector.multi_reduction <add>, %5, %cst_1 [1] : vector<16x128xf32> to vector<16xf32>
    %7 = vector.shape_cast %6 : vector<16xf32> to vector<16x1xf32>
    %8 = math.log %7 : vector<16x1xf32>
    %9 = arith.addf %2, %8 : vector<16x1xf32>
    %10 = tpu.iota {dimensions = array<i32: 1>} : vector<1x128xi32>
    %c0_2 = arith.constant 0 : index
    %c0_3 = arith.constant 0 : index
    %11 = vector.load %arg2[%c0_2, %c0_3] : memref<16x1xi32, #tpu.memory_space<vmem>>, vector<16x1xi32>
    %12 = vector.broadcast %10 : vector<1x128xi32> to vector<16x128xi32>
    %13 = vector.broadcast %11 : vector<16x1xi32> to vector<16x128xi32>
    %14 = arith.cmpi eq, %12, %13 : vector<16x128xi32>
    %cst_4 = arith.constant 0.000000e+00 : f32
    %15 = vector.broadcast %cst_4 : f32 to vector<16x128xf32>
    %16 = arith.select %14, %0, %15 : vector<16x128xi1>, vector<16x128xf32>
    %cst_5 = arith.constant dense<0.000000e+00> : vector<16xf32>
    %17 = vector.multi_reduction <add>, %16, %cst_5 [1] : vector<16x128xf32> to vector<16xf32>
    %18 = vector.shape_cast %17 : vector<16xf32> to vector<16x1xf32>
    %cst_6 = arith.constant dense<0.000000e+00> : vector<16xf32>
    %19 = vector.multi_reduction <add>, %0, %cst_6 [1] : vector<16x128xf32> to vector<16xf32>
    %20 = vector.shape_cast %19 : vector<16xf32> to vector<16x1xf32>
    %cst_7 = arith.constant 0.899999976 : f32
    %21 = vector.broadcast %cst_7 : f32 to vector<16x1xf32>
    %22 = arith.mulf %21, %18 : vector<16x1xf32>
    %23 = arith.subf %9, %22 : vector<16x1xf32>
    %cst_8 = arith.constant 7.812500e-04 : f32
    %24 = vector.broadcast %cst_8 : f32 to vector<16x1xf32>
    %25 = arith.mulf %24, %20 : vector<16x1xf32>
    %26 = arith.subf %23, %25 : vector<16x1xf32>
    %c16_i32 = arith.constant 16 : i32
    %27 = arith.muli %arg0, %c16_i32 : i32
    %28 = tpu.iota {dimensions = array<i32: 0>} : vector<16x1xi32>
    %29 = vector.broadcast %27 : i32 to vector<16x1xi32>
    %30 = arith.addi %29, %28 : vector<16x1xi32>
    %c16_i32_9 = arith.constant 16 : i32
    %31 = vector.broadcast %c16_i32_9 : i32 to vector<16x1xi32>
    %32 = arith.cmpi slt, %30, %31 : vector<16x1xi32>
    %cst_10 = arith.constant 0.000000e+00 : f32
    %33 = vector.broadcast %cst_10 : f32 to vector<16x1xf32>
    %34 = arith.select %32, %26, %33 : vector<16x1xi1>, vector<16x1xf32>
    %cst_11 = arith.constant dense<0.000000e+00> : vector<1xf32>
    %35 = vector.multi_reduction <add>, %34, %cst_11 [0] : vector<16x1xf32> to vector<1xf32>
    %36 = vector.shape_cast %35 : vector<1xf32> to vector<1x1xf32>
    %37 = vector.shape_cast %36 : vector<1x1xf32> to vector<1x1xf32>
    %38 = vector.broadcast %37 : vector<1x1xf32> to vector<8x128xf32>
    %c0_12 = arith.constant 0 : index
    %c0_13 = arith.constant 0 : index
    %39 = vector.load %arg3[%c0_12, %c0_13] : memref<8x128xf32, #tpu.memory_space<vmem>>, vector<8x128xf32>
    tpu.vector_store %arg3[%c0_12, %c0_13], %38 {strides = array<i32>} : memref<8x128xf32, #tpu.memory_space<vmem>>, vector<8x128xf32>,
    return
  }
  func.func @transform_0(%arg0: i32) -> (i32, i32) {
    %c0_i32 = arith.constant 0 : i32
    %c0_i32_0 = arith.constant 0 : i32
    return %arg0, %c0_i32 : i32, i32
  }
  func.func @transform_1(%arg0: i32) -> (i32, i32) {
    %c0_i32 = arith.constant 0 : i32
    %c0_i32_0 = arith.constant 0 : i32
    return %arg0, %c0_i32 : i32, i32
  }
  func.func @transform_2(%arg0: i32) -> (i32, i32) {
    %c0_i32 = arith.constant 0 : i32
    %c0_i32_0 = arith.constant 0 : i32
    return %arg0, %c0_i32 : i32, i32
  }
}

</mosaic_0001>

<llo_original>
// kernel: tpu_custom_call.1
$region0: #{tpu_custom_call.1}
  #allocation0 [shape = 'u32[]', space=smem, size = 0x4, offset = 0x4, fixed_abs, tag = 'smem constant byte address 0x4 - core index']
  #allocation1 [shape = 'u32[144,128]{1,0:T(1,128)}', space=vmem, size = 0x12000, scoped, tag = 'internal scratch']
  %s0 = inlined_call_operand.vmem [shape: f32[16,128], index: 0, kind: input, shape index: {}]
  %s1 = inlined_call_operand.vmem [shape: s32[16,1], index: 1, kind: input, shape index: {}]
  %s2 = inlined_call_operand.hbm [shape: f32[8,128], index: 2, kind: output, shape index: {}]
  %s3 = sld [smem:[#allocation0]]
  $region18: #{tpu_custom_call.1} parent=0
    _
  %s5 = ssub.s32 1, %s3
  %s6 = scalar_select 0, %s5, %s3
  $region1: #{tpu_custom_call.1} parent=0
    #allocation2 [shape = 'u8[4096]{0}', space=vmem, size = 0x1000, scoped, tag = 'output window, operand 0, single buffered']
    #allocation3 [shape = 's32[1]{0}', space=sflag, size = 0x4, scoped, tag = 'scoped memory for tpu_custom_call.1']
    %7 = vsyncpa [#allocation3], 0
    // Predicated region
    $region2: #{tpu_custom_call.1} parent=1 // pred_check
      _
    $region3: #{tpu_custom_call.1} parent=1 // pred_check_branch
      %9 = sbr.rel (0) target = $region5
    $region4: #{tpu_custom_call.1} parent=1 // pred_region
      _
    $region5: #{tpu_custom_call.1} parent=1 // pred_fallthru
      _
    // Predicated region
    $region6: #{tpu_custom_call.1} parent=1 // pred_check
      _
    $region7: #{tpu_custom_call.1} parent=1 // pred_check_branch
      %11 = sbr.rel (0) target = $region9
    $region8: #{tpu_custom_call.1} parent=1 // pred_region
      _
    $region9: #{tpu_custom_call.1} parent=1 // pred_fallthru
      _
    %v12 = vld [vmem:[%s0] sm:$0xff]
    %v13 = vld [vmem:[%s0 + $0x8] sm:$0xff]
    %14 = vmax.xlane.f32.xlu0 %v12
    %v15 = vpop.xlane.xlu0 %14
    %16 = vmax.xlane.f32.xlu0 %v13
    %v17 = vpop.xlane.xlu0 %16
    %v18 = vsub.f32 %v12, %v15
    %v19 = vsub.f32 %v13, %v17
    %v20 = vmul.f32 %v18, 1.442695
    %v21 = vpow.pop %v20
    %v22 = vmul.f32 %v19, 1.442695
    %v23 = vpow.pop %v22
    %24 = vadd.xlane.f32.xlu0 %v21
    %v25 = vpop.xlane.xlu0 %24
    %26 = vadd.xlane.f32.xlu0 %v23
    %v27 = vpop.xlane.xlu0 %26
    %v28 = vlog2.pop %v25
    %v29 = vmul.f32 %v28, 0.6931472
    %v30 = vlog2.pop %v27
    %v31 = vmul.f32 %v30, 0.6931472
    %v32 = vadd.f32 %v15, %v29
    %v33 = vadd.f32 %v17, %v31
    %v34 = vlaneseq
    %v35 = vand.u32 %v34, 127
    %v36 = vld [vmem:[%s1] sm:$0xff]
    %v37 = vld [vmem:[%s1 + $0x8] sm:$0xff]
    %38 = vset.pattern.permute.xlu0 0
    %39 = vperm.xlu0 %38, %v36
    %v40 = vpop.permute.xlu0 %39
    %41 = vset.pattern.permute.xlu0 0
    %42 = vperm.xlu0 %41, %v37
    %v43 = vpop.permute.xlu0 %42
    %vm44 = vcmp.eq.s32.totalorder %v35, %v40
    %vm45 = vcmp.eq.s32.totalorder %v35, %v43
    %v46 = vsel %vm44, %v12, 0.0
    %v47 = vsel %vm45, %v13, 0.0
    %48 = vadd.xlane.f32.xlu0 %v46
    %v49 = vpop.xlane.xlu0 %48
    %50 = vadd.xlane.f32.xlu0 %v47
    %v51 = vpop.xlane.xlu0 %50
    %52 = vadd.xlane.f32.xlu0 %v12
    %v53 = vpop.xlane.xlu0 %52
    %54 = vadd.xlane.f32.xlu0 %v13
    %v55 = vpop.xlane.xlu0 %54
    %v56 = vmul.f32 %v49, 0.9
    %v57 = vmul.f32 %v51, 0.9
    %v58 = vsub.f32 %v32, %v56
    %v59 = vsub.f32 %v33, %v57
    %v60 = vmul.f32 %v53, 0.00078125
    %v61 = vmul.f32 %v55, 0.00078125
    %v62 = vsub.f32 %v58, %v60
    %v63 = vsub.f32 %v59, %v61
    %s64 = smul.u32 0, 16
    %v65 = vlaneseq
    %v66 = vshrl.u32 %v65, 7
    %v67 = vadd.s32 %v66, 8
    %v68 = vstv %s64
    %v69 = vadd.s32 %v68, %v66
    %v70 = vadd.s32 %v68, %v67
    %vm71 = vcmp.lt.s32.totalorder %v69, 16
    %vm72 = vcmp.lt.s32.totalorder %v70, 16
    %v73 = vsel %vm71, %v62, 0.0
    %v74 = vsel %vm72, %v63, 0.0
    %v75 = vadd.f32 %v73, %v74
    %v76 = vrot.slane %v75, 4
    %v77 = vadd.f32 %v75, %v76
    %v78 = vrot.slane %v77, 2
    %v79 = vadd.f32 %v77, %v78
    %v80 = vrot.slane %v79, 1
    %v81 = vadd.f32 %v79, %v80
    %82 = vst [vmem:[#allocation2] sm:$0xff] %v81
    // Predicated region
    $region10: #{tpu_custom_call.1} parent=1 // pred_check
      _
    $region11: #{tpu_custom_call.1} parent=1 // pred_check_branch
      %84 = sbr.rel (0) target = $region13
    $region12: #{tpu_custom_call.1} parent=1 // pred_region
      %s86 = ssub.s32 128, 128
      %87 = vsyncadd [#allocation3], %s86
      %s89 = sshll.u32 [#allocation2], 4
      %s90 = int_to_ptr.vmem [resolvable:$true] %s89
      %92 = dma.vmem_to_hbm [thread:$0]  %s90, 128, %s2, [#allocation3]
    $region13: #{tpu_custom_call.1} parent=1 // pred_fallthru
      _
    // Predicated region
    $region14: #{tpu_custom_call.1} parent=1 // pred_check
      _
    $region15: #{tpu_custom_call.1} parent=1 // pred_check_branch
      %94 = sbr.rel (0) target = $region17
    $region16: #{tpu_custom_call.1} parent=1 // pred_region
      %95 = dma.done [#allocation3], 128
    $region17: #{tpu_custom_call.1} parent=1 // pred_fallthru
      _
    %96 = vsyncpa [#allocation3], 1

</llo_original>
